<compile_context>
chip_gen: v7x
topology: tpu7x:2x2x1
jax: 0.10.0
libtpu: 0.0.40
codegen_flags: <defaults>
</compile_context>

<pallas_src>
import functools

import jax
import jax.numpy as jnp
from jax.experimental import pallas as pl
from jax.experimental.pallas import tpu as pltpu


def _focal_kernel(x_ref, t_ref, a_ref, out_ref, *, gamma, hw, tile_hw):
    x = x_ref[0].astype(jnp.float32)       # (C, T)  logits, classes on sublanes
    t = t_ref[0]                           # (1, T)  int32 class indices
    a = a_ref[...].astype(jnp.float32)     # (C, 1)  per-class alpha

    # per-pixel (column-wise) log-softmax over the class axis
    m = jnp.max(x, axis=0, keepdims=True)                       # (1, T)
    z = x - m
    lse = jnp.log(jnp.sum(jnp.exp(z), axis=0, keepdims=True))   # (1, T)
    logp = z - lse                                              # (C, T)

    # gather logpt / alpha at the target class via one-hot select
    cls = jax.lax.broadcasted_iota(jnp.int32, logp.shape, 0)    # (C, T)
    onehot = cls == t                                           # (C, T)
    logpt = jnp.sum(jnp.where(onehot, logp, 0.0), axis=0, keepdims=True)  # (1, T)
    at = jnp.sum(jnp.where(onehot, a, 0.0), axis=0, keepdims=True)        # (1, T)

    pt = jnp.exp(logpt)
    one_minus_pt = 1.0 - pt
    if gamma == 2.0:
        focal = one_minus_pt * one_minus_pt           # VPU multiply, no pow
    elif gamma == 1.0:
        focal = one_minus_pt
    elif gamma == 0.0:
        focal = jnp.ones_like(one_minus_pt)
    else:
        # TODO(synk): non-integer gamma falls back to pow (exp/log on the EUP).
        focal = jnp.power(one_minus_pt, gamma)

    loss = -focal * (logpt * at)                      # (1, T)

    # mask the ragged tail of the last pixel tile (values there are undefined)
    if hw % tile_hw != 0:
        j = pl.program_id(1)
        pix = j * tile_hw + jax.lax.broadcasted_iota(jnp.int32, loss.shape, 1)
        loss = jnp.where(pix < hw, loss, 0.0)

    # per-block partial sum written to this block's own (8,128) output tile
    s = jnp.sum(loss)
    rows = jax.lax.broadcasted_iota(jnp.int32, (8, 128), 0)
    cols = jax.lax.broadcasted_iota(jnp.int32, (8, 128), 1)
    out_ref[0] = jnp.where((rows == 0) & (cols == 0), s, jnp.float32(0.0))


def _pick_tile_hw(hw, c, vmem_budget=8 * 1024 * 1024):
    """Largest pixel tile (multiple of 128) keeping double-buffered inputs in budget."""
    per_pixel = (c + 1) * 4 * 2          # logits + targets, double buffered, f32/i32
    t = vmem_budget // per_pixel
    t = max(min(t, 32768), 128)
    t = (t // 128) * 128
    return hw if hw <= t else t          # full spatial dim is always a legal block


def focal_loss(logits_nchw, target_nhw, *, gamma=2.0, alpha=None,
               size_average=True, tile_hw=None):
    N, C, H, W = logits_nchw.shape
    HW = H * W
    P = N * HW

    x = logits_nchw.reshape(N, C, HW)                    # free view of native NCHW
    t = target_nhw.reshape(N, 1, HW).astype(jnp.int32)

    # alpha handling mirrors the PyTorch module
    if alpha is None:
        a = jnp.ones((C, 1), jnp.float32)
    elif isinstance(alpha, (float, int)):
        a = jnp.array([alpha, 1.0 - alpha], jnp.float32).reshape(C, 1)
    else:
        a = jnp.asarray(alpha, jnp.float32).reshape(C, 1)

    if tile_hw is None:
        tile_hw = _pick_tile_hw(HW, C)
    num_j = pl.cdiv(HW, tile_hw)
    num_blocks = N * num_j

    kernel = functools.partial(_focal_kernel, gamma=float(gamma),
                               hw=HW, tile_hw=tile_hw)

    cost = pl.CostEstimate(
        flops=8 * P * C,
        transcendentals=P * (C + 2),
        bytes_accessed=P * C * 4 + P * 4 + num_blocks * 8 * 128 * 4,
    )

    partials = pl.pallas_call(
        kernel,
        out_shape=jax.ShapeDtypeStruct((num_blocks, 8, 128), jnp.float32),
        grid_spec=pltpu.PrefetchScalarGridSpec(
            num_scalar_prefetch=0,
            grid=(N, num_j),
            in_specs=[
                pl.BlockSpec((1, C, tile_hw), lambda n, j: (n, 0, j)),  # logits
                pl.BlockSpec((1, 1, tile_hw), lambda n, j: (n, 0, j)),  # targets
                pl.BlockSpec((C, 1), lambda n, j: (0, 0)),              # alpha
            ],
            out_specs=pl.BlockSpec((1, 8, 128),
                                   lambda n, j: (n * num_j + j, 0, 0)),
        ),
        compiler_params=pltpu.CompilerParams(
            dimension_semantics=("parallel", "parallel"),
            vmem_limit_bytes=32 * 1024 * 1024,
        ),
        cost_estimate=cost,
    )(x, t, a)

    total = jnp.sum(partials)
    if size_average:
        return total / jnp.float32(P)
    return total


def _focal_loss_ref(logits_nchw, target_nhw, *, gamma=2.0, alpha=None,
                    size_average=True):
    """Pure-JAX reference mirroring the PyTorch forward."""
    N, C, H, W = logits_nchw.shape
    x = jnp.transpose(logits_nchw, (0, 2, 3, 1)).reshape(-1, C)
    t = target_nhw.reshape(-1).astype(jnp.int32)
    logp = jax.nn.log_softmax(x, axis=1)
    logpt = jnp.take_along_axis(logp, t[:, None], axis=1)[:, 0]
    pt = jnp.exp(logpt)
    if alpha is not None:
        if isinstance(alpha, (float, int)):
            alpha = [alpha, 1.0 - alpha]
        at = jnp.asarray(alpha, jnp.float32)[t]
        logpt = logpt * at
    loss = -1.0 * (1.0 - pt) ** gamma * logpt
    return jnp.mean(loss) if size_average else jnp.sum(loss)


if __name__ == "__main__":
    key = jax.random.PRNGKey(0)
    k1, k2 = jax.random.split(key)

    N, C, H, W = 2, 4, 16, 16
    logits = jax.random.normal(k1, (N, C, H, W), jnp.float32)
    target = jax.random.randint(k2, (N, H, W), 0, C, dtype=jnp.int32)
    alpha = [0.25, 0.5, 0.15, 0.1]     # per-class weights (len == C)
    gamma = 2.0

    out = focal_loss(logits, target, gamma=gamma, alpha=alpha, size_average=True)
    out = jax.block_until_ready(out)

    ref = _focal_loss_ref(logits, target, gamma=gamma, alpha=alpha,
                          size_average=True)
    assert jnp.allclose(out, ref, rtol=1e-5, atol=1e-5), (out, ref)

    print("KERNEL_OK")
</pallas_src>

<mosaic_0001>
module attributes {stable_mosaic.version = 11 : i64} {
  func.func @_focal_kernel(%arg0: i32, %arg1: i32, %arg2: memref<1x4x256xf32, #tpu.memory_space<vmem>>, %arg3: memref<1x1x256xi32, #tpu.memory_space<vmem>>, %arg4: memref<4x1xf32, #tpu.memory_space<vmem>>, %arg5: memref<1x8x128xf32, #tpu.memory_space<vmem>>) attributes {dimension_semantics = [#tpu.dimension_semantics<parallel>, #tpu.dimension_semantics<parallel>], iteration_bounds = array<i64: 2, 1>, scalar_prefetch = 0 : i64, scratch_operands = 0 : i64, tpu.core_type = #tpu.core_type<tc>, window_params = [{transform_indices = @transform_0, window_bounds = array<i64: 1, 4, 256>}, {transform_indices = @transform_1, window_bounds = array<i64: 1, 1, 256>}, {pipeline_mode = #tpu.pipeline_mode<synchronous>, transform_indices = @transform_2, window_bounds = array<i64: 4, 1>}, {transform_indices = @transform_3, window_bounds = array<i64: 1, 8, 128>}]} {
    %c0 = arith.constant 0 : index
    %c0_0 = arith.constant 0 : index
    %c0_1 = arith.constant 0 : index
    %0 = vector.load %arg2[%c0, %c0_0, %c0_1] : memref<1x4x256xf32, #tpu.memory_space<vmem>>, vector<1x4x256xf32>
    %1 = vector.shape_cast %0 : vector<1x4x256xf32> to vector<4x256xf32>
    %c0_2 = arith.constant 0 : index
    %c0_3 = arith.constant 0 : index
    %c0_4 = arith.constant 0 : index
    %2 = vector.load %arg3[%c0_2, %c0_3, %c0_4] : memref<1x1x256xi32, #tpu.memory_space<vmem>>, vector<1x1x256xi32>
    %3 = vector.shape_cast %2 : vector<1x1x256xi32> to vector<1x256xi32>
    %c0_5 = arith.constant 0 : index
    %c0_6 = arith.constant 0 : index
    %4 = vector.load %arg4[%c0_5, %c0_6] : memref<4x1xf32, #tpu.memory_space<vmem>>, vector<4x1xf32>
    %cst = arith.constant dense<0xFF800000> : vector<256xf32>
    %5 = vector.multi_reduction <maximumf>, %1, %cst [0] : vector<4x256xf32> to vector<256xf32>
    %6 = vector.shape_cast %5 : vector<256xf32> to vector<1x256xf32>
    %7 = vector.broadcast %6 : vector<1x256xf32> to vector<4x256xf32>
    %8 = arith.subf %1, %7 : vector<4x256xf32>
    %9 = math.exp %8 : vector<4x256xf32>
    %cst_7 = arith.constant dense<0.000000e+00> : vector<256xf32>
    %10 = vector.multi_reduction <add>, %9, %cst_7 [0] : vector<4x256xf32> to vector<256xf32>
    %11 = vector.shape_cast %10 : vector<256xf32> to vector<1x256xf32>
    %12 = math.log %11 : vector<1x256xf32>
    %13 = vector.broadcast %12 : vector<1x256xf32> to vector<4x256xf32>
    %14 = arith.subf %8, %13 : vector<4x256xf32>
    %15 = tpu.iota {dimensions = array<i32: 0>} : vector<4x256xi32>
    %16 = vector.broadcast %3 : vector<1x256xi32> to vector<4x256xi32>
    %17 = arith.cmpi eq, %15, %16 : vector<4x256xi32>
    %cst_8 = arith.constant 0.000000e+00 : f32
    %18 = vector.broadcast %cst_8 : f32 to vector<4x256xf32>
    %19 = arith.select %17, %14, %18 : vector<4x256xi1>, vector<4x256xf32>
    %cst_9 = arith.constant dense<0.000000e+00> : vector<256xf32>
    %20 = vector.multi_reduction <add>, %19, %cst_9 [0] : vector<4x256xf32> to vector<256xf32>
    %21 = vector.shape_cast %20 : vector<256xf32> to vector<1x256xf32>
    %cst_10 = arith.constant 0.000000e+00 : f32
    %22 = vector.shape_cast %4 : vector<4x1xf32> to vector<4x1xf32>
    %23 = vector.broadcast %22 : vector<4x1xf32> to vector<4x256xf32>
    %24 = vector.broadcast %cst_10 : f32 to vector<4x256xf32>
    %25 = arith.select %17, %23, %24 : vector<4x256xi1>, vector<4x256xf32>
    %cst_11 = arith.constant dense<0.000000e+00> : vector<256xf32>
    %26 = vector.multi_reduction <add>, %25, %cst_11 [0] : vector<4x256xf32> to vector<256xf32>
    %27 = vector.shape_cast %26 : vector<256xf32> to vector<1x256xf32>
    %28 = math.exp %21 : vector<1x256xf32>
    %cst_12 = arith.constant 1.000000e+00 : f32
    %29 = vector.broadcast %cst_12 : f32 to vector<1x256xf32>
    %30 = arith.subf %29, %28 : vector<1x256xf32>
    %31 = arith.mulf %30, %30 : vector<1x256xf32>
    %cst_13 = arith.constant 0.000000e+00 : f32
    %32 = vector.broadcast %cst_13 : f32 to vector<1x256xf32>
    %33 = arith.subf %32, %31 : vector<1x256xf32>
    %34 = arith.mulf %21, %27 : vector<1x256xf32>
    %35 = arith.mulf %33, %34 : vector<1x256xf32>
    %36 = vector.shape_cast %35 : vector<1x256xf32> to vector<1x1x256xf32>
    %cst_14 = arith.constant dense<0.000000e+00> : vector<1xf32>
    %37 = vector.multi_reduction <add>, %36, %cst_14 [1, 2] : vector<1x1x256xf32> to vector<1xf32>
    %38 = vector.shape_cast %37 : vector<1xf32> to vector<1x1x1xf32>
    %39 = vector.extract %38[0, 0, 0] : f32 from vector<1x1x1xf32>
    %40 = tpu.iota {dimensions = array<i32: 0>} : vector<8x128xi32>
    %41 = tpu.iota {dimensions = array<i32: 1>} : vector<8x128xi32>
    %c0_i32 = arith.constant 0 : i32
    %42 = vector.broadcast %c0_i32 : i32 to vector<8x128xi32>
    %43 = arith.cmpi eq, %40, %42 : vector<8x128xi32>
    %c0_i32_15 = arith.constant 0 : i32
    %44 = vector.broadcast %c0_i32_15 : i32 to vector<8x128xi32>
    %45 = arith.cmpi eq, %41, %44 : vector<8x128xi32>
    %46 = arith.andi %43, %45 : vector<8x128xi1>
    %cst_16 = arith.constant 0.000000e+00 : f32
    %47 = vector.broadcast %39 : f32 to vector<8x128xf32>
    %48 = vector.broadcast %cst_16 : f32 to vector<8x128xf32>
    %49 = arith.select %46, %47, %48 : vector<8x128xi1>, vector<8x128xf32>
    %c0_17 = arith.constant 0 : index
    %c0_18 = arith.constant 0 : index
    %c0_19 = arith.constant 0 : index
    %50 = vector.load %arg5[%c0_17, %c0_18, %c0_19] : memref<1x8x128xf32, #tpu.memory_space<vmem>>, vector<1x8x128xf32>
    %51 = vector.shape_cast %50 : vector<1x8x128xf32> to vector<8x128xf32>
    %52 = vector.shape_cast %49 : vector<8x128xf32> to vector<1x8x128xf32>
    tpu.vector_store %arg5[%c0_17, %c0_18, %c0_19], %52 {strides = array<i32>} : memref<1x8x128xf32, #tpu.memory_space<vmem>>, vector<1x8x128xf32>,
    return
  }
  func.func @transform_0(%arg0: i32, %arg1: i32) -> (i32, i32, i32) {
    %c0_i32 = arith.constant 0 : i32
    %c0_i32_0 = arith.constant 0 : i32
    return %arg0, %c0_i32, %arg1 : i32, i32, i32
  }
  func.func @transform_1(%arg0: i32, %arg1: i32) -> (i32, i32, i32) {
    %c0_i32 = arith.constant 0 : i32
    %c0_i32_0 = arith.constant 0 : i32
    return %arg0, %c0_i32, %arg1 : i32, i32, i32
  }
  func.func @transform_2(%arg0: i32, %arg1: i32) -> (i32, i32) {
    %c0_i32 = arith.constant 0 : i32
    %c0_i32_0 = arith.constant 0 : i32
    %c0_i32_1 = arith.constant 0 : i32
    return %c0_i32, %c0_i32_0 : i32, i32
  }
  func.func @transform_3(%arg0: i32, %arg1: i32) -> (i32, i32, i32) {
    %c1_i32 = arith.constant 1 : i32
    %0 = arith.muli %arg0, %c1_i32 : i32
    %1 = arith.addi %0, %arg1 : i32
    %c0_i32 = arith.constant 0 : i32
    %c0_i32_0 = arith.constant 0 : i32
    %c0_i32_1 = arith.constant 0 : i32
    return %1, %c0_i32, %c0_i32_0 : i32, i32, i32
  }
}

</mosaic_0001>

<llo_original>
// kernel: tpu_custom_call.1
$region0: #{tpu_custom_call.1}
  #allocation0 [shape = 'u32[]', space=smem, size = 0x4, offset = 0x4, fixed_abs, tag = 'smem constant byte address 0x4 - core index']
  #allocation1 [shape = 'u32[144,128]{1,0:T(1,128)}', space=vmem, size = 0x12000, scoped, tag = 'internal scratch']
  %s0 = inlined_call_operand.hbm [shape: f32[2,4,256], index: 0, kind: input, shape index: {}]
  %s1 = inlined_call_operand.vmem [shape: s32[2,1,256], index: 1, kind: input, shape index: {}]
  %s2 = inlined_call_operand.vmem [shape: f32[4,1], index: 2, kind: input, shape index: {}]
  %s3 = inlined_call_operand.hbm [shape: f32[2,8,128], index: 3, kind: output, shape index: {}]
  %s4 = sld [smem:[#allocation0]]
  $region49: #{tpu_custom_call.1} parent=0
    _
  %s6 = ssub.s32 1, %s4
  %s7 = scalar_select 0, %s6, %s4
  $region1: #{tpu_custom_call.1} parent=0
    #allocation2 [shape = 'u8[8192]{0}', space=vmem, size = 0x2000, scoped, tag = 'input window, operand 0']
    #allocation3 [shape = 's32[2]{0}', space=sflag, size = 0x8, scoped, tag = 'scoped memory for tpu_custom_call.1']
    #allocation4 [shape = 's32[2]{0}', space=sflag, size = 0x8, scoped, tag = 'scoped memory for tpu_custom_call.1']
    #allocation5 [shape = 'u8[8192]{0}', space=vmem, size = 0x2000, scoped, tag = 'output window, operand 0']
    %8 = vsyncpa [#allocation3], 0
    %s9 = scalar_lea.sflag [#allocation3], 1
    %10 = vsyncpa %s9, 0
    %11 = vsyncpa [#allocation4], 0
    %s12 = scalar_lea.sflag [#allocation4], 1
    %13 = vsyncpa %s12, 0
    loop: start=0, step=1, limit=4
    $region2: #{tpu_custom_call.1} parent=1 // loop_pre_header
      _
    $region3: #{tpu_custom_call.1} parent=1 // loop_header
      %s15 = sphi 0, %s19
      %p16 = scmp.ge.s32.totalorder %s15, 4
      %s22 = sphi 0, %s34
      %s23 = sphi 0, %s30
      %s24 = sphi 0, %s22
      %s25 = sphi 0, %s23
      %s26 = sphi 0, %s24
      %s27 = sphi 0, %s25
      %s39 = sphi 0, %s41
      %s42 = sphi 0, %s39
      %s43 = sphi 0, %s42
      %s59 = sphi 0, %s43
      %s67 = sphi 0, %s69
      %s70 = sphi 0, %s67
      %s71 = sphi 0, %s70
      %s87 = sphi 0, %s71
      %s91 = sphi 0, %s91
      %s93 = sphi 0, %s91
      %s94 = sphi 0, %s93
      %s108 = sphi 0, %s94
      %s116 = sphi 0, %s118
      %s119 = sphi 0, %s116
      %s120 = sphi 0, %s119
      %s136 = sphi 0, %s120
    $region4: #{tpu_custom_call.1} parent=1 // loop_header_branch
      %18 = sbr.rel (%p16) target = $region8
    $region5: #{tpu_custom_call.1} parent=1 // loop_body
      %s20 = ssub.s32 %s15, 1
      %s21 = ssub.s32 %s15, 2
      %s28 = sadd.s32 1, %s23
      %p29 = scmp.ge.s32.totalorder %s28, 1
      %s30 = scalar_select %p29, 0, %s28
      %s31 = sadd.s32 1, %s22
      %s32 = scalar_select %p29, %s31, %s22
      %p33 = scmp.ge.s32.totalorder %s32, 2
      %s34 = scalar_select %p33, 0, %s32
      %s35 = ssub.s32 %s22, %s34
      %s36 = ssub.s32 %s23, %s30
      %s37 = sor.u32 %s35, %s36
      %p38 = scmp.eq.s32.totalorder %s37, 0
      %s40 = sadd.s32 %s39, 1
      %s41 = scalar_select %p38, %s39, %s40
      %p44 = pneg %p38
      %p45 = scmp.eq.s32.totalorder %s15, 1
      %p46 = por %p44, %p45
      %p47 = scmp.ne.s32.totalorder %s39, %s42
      %p48 = scmp.eq.s32.totalorder %s15, 0
      %p49 = por %p47, %p48
      %p50 = scmp.ne.s32.totalorder %s39, %s42
      %p51 = scmp.eq.s32.totalorder %s20, 1
      %p52 = por %p50, %p51
      %p53 = scmp.ne.s32.totalorder %s42, %s43
      %p54 = scmp.eq.s32.totalorder %s20, 0
      %p55 = por %p53, %p54
      %p56 = scmp.ne.s32.totalorder %s42, %s43
      %p57 = scmp.eq.s32.totalorder %s21, 1
      %p58 = por %p56, %p57
      %p60 = scmp.ne.s32.totalorder %s43, %s59
      %p61 = scmp.eq.s32.totalorder %s21, 0
      %p62 = por %p60, %p61
      %s63 = ssub.s32 %s22, %s34
      %s64 = ssub.s32 %s23, %s30
      %s65 = sor.u32 %s63, %s64
      %p66 = scmp.eq.s32.totalorder %s65, 0
      %s68 = sadd.s32 %s67, 1
      %s69 = scalar_select %p66, %s67, %s68
      %p72 = pneg %p66
      %p73 = scmp.eq.s32.totalorder %s15, 1
      %p74 = por %p72, %p73
      %p75 = scmp.ne.s32.totalorder %s67, %s70
      %p76 = scmp.eq.s32.totalorder %s15, 0
      %p77 = por %p75, %p76
      %p78 = scmp.ne.s32.totalorder %s67, %s70
      %p79 = scmp.eq.s32.totalorder %s20, 1
      %p80 = por %p78, %p79
      %p81 = scmp.ne.s32.totalorder %s70, %s71
      %p82 = scmp.eq.s32.totalorder %s20, 0
      %p83 = por %p81, %p82
      %p84 = scmp.ne.s32.totalorder %s70, %s71
      %p85 = scmp.eq.s32.totalorder %s21, 1
      %p86 = por %p84, %p85
      %p88 = scmp.ne.s32.totalorder %s71, %s87
      %p89 = scmp.eq.s32.totalorder %s21, 0
      %p90 = por %p88, %p89
      %s92 = sadd.s32 %s91, 1
      %p95 = scmp.eq.s32.totalorder %s15, 1
      %p96 = scmp.ne.s32.totalorder %s91, %s93
      %p97 = scmp.eq.s32.totalorder %s15, 0
      %p98 = por %p96, %p97
      %p99 = scmp.ne.s32.totalorder %s91, %s93
      %p100 = scmp.eq.s32.totalorder %s20, 1
      %p101 = por %p99, %p100
      %p102 = scmp.ne.s32.totalorder %s93, %s94
      %p103 = scmp.eq.s32.totalorder %s20, 0
      %p104 = por %p102, %p103
      %p105 = scmp.ne.s32.totalorder %s93, %s94
      %p106 = scmp.eq.s32.totalorder %s21, 1
      %p107 = por %p105, %p106
      %p109 = scmp.ne.s32.totalorder %s94, %s108
      %p110 = scmp.eq.s32.totalorder %s21, 0
      %p111 = por %p109, %p110
      %s112 = sadd.s32 %s22, %s23
      %s113 = sadd.s32 %s34, %s30
      %s114 = ssub.s32 %s112, %s113
      %p115 = scmp.eq.s32.totalorder %s114, 0
      %s117 = sadd.s32 %s116, 1
      %s118 = scalar_select %p115, %s116, %s117
      %p121 = pneg %p115
      %p122 = scmp.eq.s32.totalorder %s15, 1
      %p123 = por %p121, %p122
      %p124 = scmp.ne.s32.totalorder %s116, %s119
      %p125 = scmp.eq.s32.totalorder %s15, 0
      %p126 = por %p124, %p125
      %p127 = scmp.ne.s32.totalorder %s116, %s119
      %p128 = scmp.eq.s32.totalorder %s20, 1
      %p129 = por %p127, %p128
      %p130 = scmp.ne.s32.totalorder %s119, %s120
      %p131 = scmp.eq.s32.totalorder %s20, 0
      %p132 = por %p130, %p131
      %p133 = scmp.ne.s32.totalorder %s119, %s120
      %p134 = scmp.eq.s32.totalorder %s21, 1
      %p135 = por %p133, %p134
      %p137 = scmp.ne.s32.totalorder %s120, %s136
      %p138 = scmp.eq.s32.totalorder %s21, 0
      %p139 = por %p137, %p138
      %p140 = scmp.le.s32.totalorder 1, %s15
      %p141 = scmp.lt.s32.totalorder %s15, 3
      %p142 = pnand %p140, %p141
      %p143 = pneg %p142
      // Predicated region
      $region9: #{tpu_custom_call.1} parent=5 // pred_check
        _
      $region10: #{tpu_custom_call.1} parent=5 // pred_check_branch
        %145 = sbr.rel (%p142) target = $region12
      $region11: #{tpu_custom_call.1} parent=5 // pred_region
        %s146 = ssub.s32 %s15, 1
        // Predicated region
        $region13: #{tpu_custom_call.1} parent=11 // pred_check
          %p147 = pneg %p104
        $region14: #{tpu_custom_call.1} parent=11 // pred_check_branch
          %149 = sbr.rel (%p147) target = $region16
        $region15: #{tpu_custom_call.1} parent=11 // pred_region
          _
        $region16: #{tpu_custom_call.1} parent=11 // pred_fallthru
          _
      $region12: #{tpu_custom_call.1} parent=5 // pred_fallthru
        _
      %p150 = scmp.lt.s32.totalorder %s15, 2
      // Predicated region
      $region17: #{tpu_custom_call.1} parent=5 // pred_check
        %p151 = pneg %p150
      $region18: #{tpu_custom_call.1} parent=5 // pred_check_branch
        %153 = sbr.rel (%p151) target = $region20
      $region19: #{tpu_custom_call.1} parent=5 // pred_region
        // Predicated region
        $region21: #{tpu_custom_call.1} parent=19 // pred_check
          %p154 = pneg %p49
        $region22: #{tpu_custom_call.1} parent=19 // pred_check_branch
          %156 = sbr.rel (%p154) target = $region24
        $region23: #{tpu_custom_call.1} parent=19 // pred_region
          %s157 = sand.u32 %s39, 1
          %s158 = scalar_lea.sflag [#allocation3], %s157
          %s159 = sand.u32 %s39, 1
          %s160 = smul.addr %s159, 8
          %s161 = scalar_lea.vmem [#allocation2], %s160
          %s162 = smul.u32 2, %s23
          %s164 = ssub.s32 128, 128
          %165 = vsyncadd %s158, %s164
          %s166 = smul.addr %s22, 2
          %s167 = sadd.s32 %s162, %s166
          %s168 = smul.addr %s167, 64
          %s169 = scalar_lea.hbm %s0, %s168
          %s171 = sshll.u32 %s161, 4
          %s172 = int_to_ptr.vmem [resolvable:$true] %s171
          %174 = dma.hbm_to_vmem [thread:$0]  %s169, 128, %s172, %s158
        $region24: #{tpu_custom_call.1} parent=19 // pred_fallthru
          _
        // Predicated region
        $region25: #{tpu_custom_call.1} parent=19 // pred_check
          %p175 = pneg %p77
        $region26: #{tpu_custom_call.1} parent=19 // pred_check_branch
          %177 = sbr.rel (%p175) target = $region28
        $region27: #{tpu_custom_call.1} parent=19 // pred_region
          %s178 = smul.u32 2, %s23
          %p179 = scmp.lt.s32.totalorder %s22, 1
          %s180 = scalar_select %p179, %s22, 1
          %p181 = scmp.lt.s32.totalorder %s178, 1
          %s182 = scalar_select %p181, %s178, 1
          %s183 = smul.addr %s180, 2
          %s184 = sadd.s32 %s182, %s183
          %s185 = scalar_lea.vmem %s1, %s184
          %s186 = smul.u32 2, %s23
        $region28: #{tpu_custom_call.1} parent=19 // pred_fallthru
          _
      $region20: #{tpu_custom_call.1} parent=5 // pred_fallthru
        _
      %p187 = scmp.le.s32.totalorder 1, %s15
      %p188 = scmp.lt.s32.totalorder %s15, 3
      %p189 = pnand %p187, %p188
      %p190 = pneg %p189
      // Predicated region
      $region29: #{tpu_custom_call.1} parent=5 // pred_check
        _
      $region30: #{tpu_custom_call.1} parent=5 // pred_check_branch
        %192 = sbr.rel (%p189) target = $region32
      $region31: #{tpu_custom_call.1} parent=5 // pred_region
        %s193 = ssub.s32 %s15, 1
        %s194 = sand.u32 %s42, 1
        %s195 = scalar_lea.sflag [#allocation3], %s194
        %s196 = sand.u32 %s42, 1
        %s197 = smul.addr %s196, 8
        %s198 = scalar_lea.vmem [#allocation2], %s197
        // Predicated region
        $region33: #{tpu_custom_call.1} parent=31 // pred_check
          %p199 = pneg %p55
        $region34: #{tpu_custom_call.1} parent=31 // pred_check_branch
          %201 = sbr.rel (%p199) target = $region36
        $region35: #{tpu_custom_call.1} parent=31 // pred_region
          %202 = dma.done %s195, 128
        $region36: #{tpu_custom_call.1} parent=31 // pred_fallthru
          _
        %s203 = sand.u32 %s42, 1
        %s204 = scalar_lea.sflag [#allocation3], %s203
        %s205 = sand.u32 %s42, 1
        %s206 = smul.addr %s205, 8
        %s207 = scalar_lea.vmem [#allocation2], %s206
        %p208 = pneg %p55
        %p209 = pneg %p52
        %s210 = smul.u32 2, %s25
        %p211 = scmp.lt.s32.totalorder %s24, 1
        %s212 = scalar_select %p211, %s24, 1
        %p213 = scmp.lt.s32.totalorder %s210, 1
        %s214 = scalar_select %p213, %s210, 1
        %s215 = smul.addr %s212, 2
        %s216 = sadd.s32 %s214, %s215
        %s217 = scalar_lea.vmem %s1, %s216
        %p218 = pneg %p83
        %p219 = pneg %p80
        %p220 = pneg %p104
        %p221 = pneg %p101
        %p222 = pneg %p132
        %p223 = pneg %p129
        %s224 = sand.u32 %s119, 1
        %s225 = scalar_lea.sflag [#allocation4], %s224
        %s226 = sand.u32 %s119, 1
        %s227 = smul.addr %s226, 8
        %s228 = scalar_lea.vmem [#allocation5], %s227
        %s229 = smul.u32 2, %s25
        %s230 = smul.u32 2, %s25
        %p231 = scmp.lt.s32.totalorder %s24, 1
        %s232 = scalar_select %p231, %s24, 1
        %p233 = scmp.lt.s32.totalorder %s230, 1
        %s234 = scalar_select %p233, %s230, 1
        %s235 = smul.addr %s232, 2
        %s236 = sadd.s32 %s234, %s235
        %s237 = scalar_lea.vmem %s1, %s236
        %s238 = smul.u32 2, %s25
        %s239 = sadd.s32 %s24, %s25
        %v240 = vld [vmem:[%s198] sm:$0xff]
        %v241 = vld [vmem:[%s237] sm:$0x3]
        %v242 = vld [vmem:[%s2] sm:$0xf]
        %v244 = vcombine.high %v240, %v240
        %vm246 = vcmask 1043456
        %v247 = vsel %vm246, %v240, -inf
        %v248 = vrot.slane %v247, 4
        %v249 = vmax.f32 %v247, %v248
        %v250 = vrot.slane %v249, 2
        %v251 = vmax.f32 %v249, %v250
        %v252 = vrot.slane %v251, 1
        %v253 = vmax.f32 %v251, %v252
        %v254 = vsel %vm246, %v244, -inf
        %v255 = vrot.slane %v254, 4
        %v256 = vmax.f32 %v254, %v255
        %v257 = vrot.slane %v256, 2
        %v258 = vmax.f32 %v256, %v257
        %v259 = vrot.slane %v258, 1
        %v260 = vmax.f32 %v258, %v259
        %v263 = vcombine.low %v253, %v260
        %v265 = vsub.f32 %v240, %v263
        %v266 = vmul.f32 %v265, 1.442695
        %v267 = vpow.pop %v266
        %v269 = vcombine.high %v267, %v267
        %v271 = vsel %vm246, %v267, 0.0
        %v272 = vrot.slane %v271, 4
        %v273 = vadd.f32 %v271, %v272
        %v274 = vrot.slane %v273, 2
        %v275 = vadd.f32 %v273, %v274
        %v276 = vrot.slane %v275, 1
        %v277 = vadd.f32 %v275, %v276
        %v278 = vsel %vm246, %v269, 0.0
        %v279 = vrot.slane %v278, 4
        %v280 = vadd.f32 %v278, %v279
        %v281 = vrot.slane %v280, 2
        %v282 = vadd.f32 %v280, %v281
        %v283 = vrot.slane %v282, 1
        %v284 = vadd.f32 %v282, %v283
        %v285 = vlog2.pop %v277
        %v286 = vmul.f32 %v285, 0.6931472
        %v287 = vlog2.pop %v284
        %v288 = vmul.f32 %v287, 0.6931472
        %v291 = vcombine.low %v286, %v288
        %v293 = vsub.f32 %v265, %v291
        %v294 = vlaneseq
        %v295 = vshrl.u32 %v294, 7
        %v296 = vlaneseq
        %v297 = vshrl.u32 %v296, 7
        %v298 = vsub.s32 0, %v297
        %v299 = vrot.slane %v241, %v298
        %v300 = vlaneseq
        %v301 = vshrl.u32 %v300, 7
        %v302 = vsub.s32 1, %v301
        %v303 = vrot.slane %v241, %v302
        %vm304 = vcmp.eq.s32.totalorder %v295, %v299
        %vm305 = vcmp.eq.s32.totalorder %v295, %v303
        %v307 = vcombine.high %v293, %v293
        %v309 = vsel %vm304, %v293, 0.0
        %v310 = vsel %vm305, %v307, 0.0
        %v311 = vsel %vm246, %v309, 0.0
        %v312 = vrot.slane %v311, 4
        %v313 = vadd.f32 %v311, %v312
        %v314 = vrot.slane %v313, 2
        %v315 = vadd.f32 %v313, %v314
        %v316 = vrot.slane %v315, 1
        %v317 = vadd.f32 %v315, %v316
        %v318 = vsel %vm246, %v310, 0.0
        %v319 = vrot.slane %v318, 4
        %v320 = vadd.f32 %v318, %v319
        %v321 = vrot.slane %v320, 2
        %v322 = vadd.f32 %v320, %v321
        %v323 = vrot.slane %v322, 1
        %v324 = vadd.f32 %v322, %v323
        %326 = vset.pattern.permute.xlu0 0
        %327 = vperm.xlu0 %326, %v242
        %v328 = vpop.permute.xlu0 %327
        %v330 = vsel %vm304, %v328, 0.0
        %v331 = vsel %vm305, %v328, 0.0
        %v332 = vsel %vm246, %v330, 0.0
        %v333 = vrot.slane %v332, 4
        %v334 = vadd.f32 %v332, %v333
        %v335 = vrot.slane %v334, 2
        %v336 = vadd.f32 %v334, %v335
        %v337 = vrot.slane %v336, 1
        %v338 = vadd.f32 %v336, %v337
        %v339 = vsel %vm246, %v331, 0.0
        %v340 = vrot.slane %v339, 4
        %v341 = vadd.f32 %v339, %v340
        %v342 = vrot.slane %v341, 2
        %v343 = vadd.f32 %v341, %v342
        %v344 = vrot.slane %v343, 1
        %v345 = vadd.f32 %v343, %v344
        %v346 = vmul.f32 %v317, 1.442695
        %v347 = vpow.pop %v346
        %v348 = vmul.f32 %v324, 1.442695
        %v349 = vpow.pop %v348
        %v350 = vsub.f32 1.0, %v347
        %v351 = vsub.f32 1.0, %v349
        %v352 = vmul.f32 %v350, %v350
        %v353 = vmul.f32 %v351, %v351
        %v354 = vsub.f32 0.0, %v352
        %v355 = vsub.f32 0.0, %v353
        %v356 = vmul.f32 %v317, %v338
        %v357 = vmul.f32 %v324, %v345
        %v358 = vmul.f32 %v354, %v356
        %v359 = vmul.f32 %v355, %v357
        %vm360 = vcmask 1040384
        %v361 = vsel %vm360, %v358, 0.0
        %v362 = vsel %vm360, %v359, 0.0
        %v363 = vadd.f32 %v361, %v362
        %364 = vadd.xlane.f32.xlu0 %v363
        %v365 = vpop.xlane.xlu0 %364
        %v366 = vrot.slane %v365, 4
        %v367 = vadd.f32 %v365, %v366
        %v368 = vrot.slane %v367, 2
        %v369 = vadd.f32 %v367, %v368
        %v370 = vrot.slane %v369, 1
        %v371 = vadd.f32 %v369, %v370
        %s372 = vtos %v371
        %v373 = vlaneseq
        %v374 = vand.u32 %v373, 127
        %vm375 = vcmp.eq.s32.totalorder %v295, 0
        %vm376 = vcmp.eq.s32.totalorder %v374, 0
        %vm377 = vmand %vm375, %vm376
        %v378 = vstv %s372
        %v379 = vsel %vm377, %v378, 0.0
        %380 = vst [vmem:[%s228] sm:$0xff] %v379
        %s381 = sand.u32 %s119, 1
        %s382 = scalar_lea.sflag [#allocation4], %s381
        %s383 = sand.u32 %s119, 1
        %s384 = smul.addr %s383, 8
        %s385 = scalar_lea.vmem [#allocation5], %s384
        // Predicated region
        $region37: #{tpu_custom_call.1} parent=31 // pred_check
          %p386 = pneg %p129
        $region38: #{tpu_custom_call.1} parent=31 // pred_check_branch
          %388 = sbr.rel (%p386) target = $region40
        $region39: #{tpu_custom_call.1} parent=31 // pred_region
          %s389 = sadd.s32 %s24, %s25
          %s391 = ssub.s32 128, 128
          %392 = vsyncadd %s382, %s391
          %s393 = smul.addr %s389, 128
          %s394 = scalar_lea.hbm %s3, %s393
          %s396 = sshll.u32 %s385, 4
          %s397 = int_to_ptr.vmem [resolvable:$true] %s396
          %399 = dma.vmem_to_hbm [thread:$0]  %s397, 128, %s394, %s382
        $region40: #{tpu_custom_call.1} parent=31 // pred_fallthru
          _
      $region32: #{tpu_custom_call.1} parent=5 // pred_fallthru
        _
      %p400 = scmp.le.s32.totalorder 2, %s15
      // Predicated region
      $region41: #{tpu_custom_call.1} parent=5 // pred_check
        %p401 = pneg %p400
      $region42: #{tpu_custom_call.1} parent=5 // pred_check_branch
        %403 = sbr.rel (%p401) target = $region44
      $region43: #{tpu_custom_call.1} parent=5 // pred_region
        %s404 = ssub.s32 %s15, 2
        // Predicated region
        $region45: #{tpu_custom_call.1} parent=43 // pred_check
          %p405 = pneg %p135
        $region46: #{tpu_custom_call.1} parent=43 // pred_check_branch
          %407 = sbr.rel (%p405) target = $region48
        $region47: #{tpu_custom_call.1} parent=43 // pred_region
          %s408 = sand.u32 %s120, 1
          %s409 = scalar_lea.sflag [#allocation4], %s408
          %s410 = sand.u32 %s120, 1
          %s411 = smul.addr %s410, 8
          %s412 = scalar_lea.vmem [#allocation5], %s411
          %413 = dma.done %s409, 128
        $region48: #{tpu_custom_call.1} parent=43 // pred_fallthru
          _
      $region44: #{tpu_custom_call.1} parent=5 // pred_fallthru
        _
    $region6: #{tpu_custom_call.1} parent=1 // loop_footer
      %s19 = sadd.s32 1, %s15
    $region7: #{tpu_custom_call.1} parent=1 // loop_footer_branch
      %14 = sbr.rel target = $region3
    $region8: #{tpu_custom_call.1} parent=1 // loop_exit
      _
    %414 = vsyncpa [#allocation3], 1
    %s415 = scalar_lea.sflag [#allocation3], 1
    %416 = vsyncpa %s415, 1
    %417 = vsyncpa [#allocation4], 1
    %s418 = scalar_lea.sflag [#allocation4], 1
    %419 = vsyncpa %s418, 1

</llo_original>
